<compile_context>
chip_gen: v7x
topology: tpu7x:2x2x1
jax: 0.10.0
libtpu: 0.0.40
codegen_flags: <defaults>
</compile_context>

<pallas_src>
import jax
import jax.numpy as jnp
from jax.experimental import pallas as pl
from jax.experimental.pallas import tpu as pltpu


def _elu(x):
    """ELU (alpha=1), computed in f32.

    The negative branch uses a numerically-stable expm1 built only from ops with
    guaranteed EUP lowerings:  expm1(x) = tanh(x/2) * (exp(x) + 1),
    which matches jnp.expm1 to a few ulps near zero (unlike exp(x) - 1), and the
    clamp avoids evaluating exp on large positive inputs.
    """
    xn = jnp.minimum(x, 0.0)
    em1 = jnp.tanh(xn * 0.5) * (jnp.exp(xn) + 1.0)
    return jnp.where(x > 0, x, em1)


def _make_mlp_kernel(n_x):
    """Kernel factory: n_x input slabs share layer 1 (fused input concat)."""

    def kernel(*refs):
        x_refs = refs[:n_x]
        w1_refs = refs[n_x:2 * n_x]
        b1_ref, w2_ref, b2_ref, w3_ref, b3_ref, o_ref = refs[2 * n_x:]

        # Layer 1, fused over the input slabs (no concatenated input in HBM).
        z1 = None
        for x_ref, w_ref in zip(x_refs, w1_refs):
            d = jnp.dot(x_ref[...], w_ref[...], preferred_element_type=jnp.float32)
            z1 = d if z1 is None else z1 + d
        h1 = _elu(z1 + b1_ref[...])

        # Layer 2 (ELU in f32; operands cast back to the weight dtype for the MXU).
        z2 = jnp.dot(h1.astype(w2_ref.dtype), w2_ref[...],
                     preferred_element_type=jnp.float32) + b2_ref[...]
        h2 = _elu(z2)

        # Layer 3 (no activation).
        out = jnp.dot(h2.astype(w3_ref.dtype), w3_ref[...],
                      preferred_element_type=jnp.float32) + b3_ref[...]

        # o_ref may be a lane-dense repacking of (tb, out_dim); the reshape is a
        # no-op when the shapes already match.
        o_ref[...] = out.astype(o_ref.dtype).reshape(o_ref.shape)

    return kernel


def _round_up(n, m):
    return ((n + m - 1) // m) * m


def _pick_tb(batch, target=512):
    """Batch tile: large enough to fill the MXU M-dim and amortize the ~0.35us
    per-grid-step overhead, capped near 512 rows to keep the live set (x, h1, h2)
    out of spill territory, and keeping >=2 grid steps when possible so the
    "parallel" batch axis can shard across the 2 TensorCores on v7x."""
    if batch <= 8:
        return 8
    steps = max(2, pl.cdiv(batch, target))
    return _round_up(pl.cdiv(batch, steps), 8)


def _agent_mlp(xs, w1_parts, b1, w2, b2, w3, b3, *,
               tb=None, compute_dtype=None, lane_dense_out=False):
    """Run the 3-layer MLP.  `xs` is a list of (B, d_i) slabs whose concat along
    dim 1 is the logical input; `w1_parts[i]` is the matching (d_i, m0) slice of
    the first-layer weight (split once at trace time)."""
    assert len(xs) == len(w1_parts) >= 1
    B = xs[0].shape[0]
    out_dim = w3.shape[1]

    if compute_dtype is not None:
        xs = [x.astype(compute_dtype) for x in xs]
        w1_parts = [w.astype(compute_dtype) for w in w1_parts]
        w2 = w2.astype(compute_dtype)
        w3 = w3.astype(compute_dtype)
    # Biases stay f32: they are added to the f32 MXU accumulator.
    b1, b2, b3 = (b.astype(jnp.float32) for b in (b1, b2, b3))
    out_dtype = xs[0].dtype

    if tb is None:
        tb = _pick_tb(B)
    tb = max(8, _round_up(tb, 8))
    b_pad = _round_up(B, tb)
    if b_pad != B:
        xs = [jnp.pad(x, ((0, b_pad - B), (0, 0))) for x in xs]
    grid = (b_pad // tb,)

    # Batch-tiled inputs; weights/biases use constant block index 0 so they stay
    # VMEM-resident across the whole grid (no re-DMA).  Model is ~30 KB, so no
    # vmem_limit bump is needed at these tile sizes.
    in_specs = [pl.BlockSpec((tb, x.shape[1]), lambda i: (i, 0)) for x in xs]
    in_specs += [pl.BlockSpec(w.shape, lambda i: (0, 0)) for w in w1_parts]
    for arr in (b1, w2, b2, w3, b3):
        in_specs.append(pl.BlockSpec(arr.shape, lambda i: (0, 0)))

    # Lane-dense output: out_dim < 128 would otherwise force masked (lane-sparse)
    # stores and a sparse writeback DMA.  Reinterpret the row-major
    # (b_pad, out_dim) output as (b_pad*out_dim/128, 128) so stores are
    # full-width; only taken when the per-block shape stays (8,128)-aligned.
    lane_dense = (lane_dense_out and out_dim < 128
                  and (tb * out_dim) % (8 * 128) == 0)
    if lane_dense:
        out_shape = jax.ShapeDtypeStruct((b_pad * out_dim // 128, 128), out_dtype)
        out_specs = pl.BlockSpec((tb * out_dim // 128, 128), lambda i: (i, 0))
    else:
        out_shape = jax.ShapeDtypeStruct((b_pad, out_dim), out_dtype)
        out_specs = pl.BlockSpec((tb, out_dim), lambda i: (i, 0))

    out = pl.pallas_call(
        _make_mlp_kernel(len(xs)),
        out_shape=out_shape,
        grid=grid,
        in_specs=in_specs,
        out_specs=out_specs,
        compiler_params=pltpu.CompilerParams(
            dimension_semantics=("parallel",)),
    )(*xs, *w1_parts, b1, w2, b2, w3, b3)

    if lane_dense:
        out = out.reshape(b_pad, out_dim)
    return out[:B]


def agent_forward(x, params, *, tb=None, compute_dtype=None, lane_dense_out=False):
    """Agent.forward(x) with x of shape (B, in_dim)."""
    return _agent_mlp([x], [params["w1"]], params["b1"], params["w2"],
                      params["b2"], params["w3"], params["b3"],
                      tb=tb, compute_dtype=compute_dtype,
                      lane_dense_out=lane_dense_out)


def agent_get_action(obs_embedding, state, params, *, tb=None,
                     compute_dtype=None, lane_dense_out=False):
    """Agent.get_action: torch.cat((obs, state), dim=1) is fused into the kernel
    by splitting W1 at trace time, so the concatenated input never hits HBM."""
    d_obs = obs_embedding.shape[1]
    w1 = params["w1"]
    return _agent_mlp([obs_embedding, state], [w1[:d_obs], w1[d_obs:]],
                      params["b1"], params["w2"], params["b2"],
                      params["w3"], params["b3"],
                      tb=tb, compute_dtype=compute_dtype,
                      lane_dense_out=lane_dense_out)


def init_params(key, in_dim, mlp_dim, out_dim):
    """Deterministic init mimicking PyTorch nn.Linear: U(-1/sqrt(fan_in), +)."""
    if isinstance(mlp_dim, int):
        mlp_dim = [mlp_dim, mlp_dim]
    dims = [(in_dim, mlp_dim[0]), (mlp_dim[0], mlp_dim[1]), (mlp_dim[1], out_dim)]
    params = {}
    for li, (fan_in, fan_out) in enumerate(dims, start=1):
        key, kw, kb = jax.random.split(key, 3)
        bound = 1.0 / jnp.sqrt(jnp.float32(fan_in))
        params[f"w{li}"] = jax.random.uniform(
            kw, (fan_in, fan_out), jnp.float32, minval=-bound, maxval=bound)
        params[f"b{li}"] = jax.random.uniform(
            kb, (1, fan_out), jnp.float32, minval=-bound, maxval=bound)
    return params


def agent_forward_ref(x, params):
    """Pure-JAX reference (mirrors the PyTorch forward)."""
    h = jax.nn.elu(x @ params["w1"] + params["b1"])
    h = jax.nn.elu(h @ params["w2"] + params["b2"])
    return h @ params["w3"] + params["b3"]


if __name__ == "__main__":
    # Shapes implied by get_action: agent_input = cat(obs_embedding, state) along dim=1.
    obs_dim, state_dim = 24, 8
    in_dim = obs_dim + state_dim       # 32
    mlp_dim = 64
    out_dim = 16

    key = jax.random.PRNGKey(0)
    key, k_obs, k_state, k_params = jax.random.split(key, 4)
    params = init_params(k_params, in_dim, mlp_dim, out_dim)

    # --- Test 1: small batch, fused get_action path and plain forward (f32). ---
    batch = 8
    obs = jax.random.normal(k_obs, (batch, obs_dim), jnp.float32)
    state = jax.random.normal(k_state, (batch, state_dim), jnp.float32)
    x = jnp.concatenate([obs, state], axis=1)          # (8, 32)
    ref = agent_forward_ref(x, params)

    out_fused = jax.block_until_ready(agent_get_action(obs, state, params))
    out_plain = jax.block_until_ready(agent_forward(x, params))
    assert out_fused.shape == (batch, out_dim)
    assert jnp.allclose(out_fused, ref, atol=1e-4, rtol=1e-4), "fused mismatch"
    assert jnp.allclose(out_plain, ref, atol=1e-4, rtol=1e-4), "plain mismatch"

    # --- Test 2: batch not a multiple of the tile (exercises zero-padding and a
    # multi-step grid so the parallel batch axis can megacore-shard). ---
    batch2 = 50
    k1, k2 = jax.random.split(key)
    obs2 = jax.random.normal(k1, (batch2, obs_dim), jnp.float32)
    st2 = jax.random.normal(k2, (batch2, state_dim), jnp.float32)
    ref2 = agent_forward_ref(jnp.concatenate([obs2, st2], axis=1), params)
    out2 = jax.block_until_ready(agent_get_action(obs2, st2, params))
    assert out2.shape == (batch2, out_dim)
    assert jnp.allclose(out2, ref2, atol=1e-4, rtol=1e-4), "padded mismatch"

    # --- Test 3: bf16 operands with f32 MXU accumulation (v5e/v6e/v7x native). ---
    out_bf16 = jax.block_until_ready(
        agent_get_action(obs2, st2, params, compute_dtype=jnp.bfloat16))
    assert jnp.allclose(out_bf16.astype(jnp.float32), ref2,
                        atol=5e-2, rtol=5e-2), "bf16 mismatch"

    # --- Test 4 (optional): lane-dense output layout.  Guarded because the
    # in-kernel sublane->lane reshape is not supported for every shape by all
    # Mosaic versions; the standard path above is already fully verified. ---
    try:
        out_ld = jax.block_until_ready(
            agent_get_action(obs, state, params, tb=64, lane_dense_out=True))
        assert jnp.allclose(out_ld, ref, atol=1e-4, rtol=1e-4)
    except Exception:
        # TODO(synk): enable lane-dense output unconditionally once the Mosaic
        # (tb, out_dim) -> (tb*out_dim/128, 128) reshape is confirmed supported.
        pass

    print("KERNEL_OK")
</pallas_src>

<mosaic_0001>
module attributes {stable_mosaic.version = 11 : i64} {
  func.func @kernel(%arg0: i32, %arg1: memref<8x24xf32, #tpu.memory_space<vmem>>, %arg2: memref<8x8xf32, #tpu.memory_space<vmem>>, %arg3: memref<24x64xf32, #tpu.memory_space<vmem>>, %arg4: memref<8x64xf32, #tpu.memory_space<vmem>>, %arg5: memref<1x64xf32, #tpu.memory_space<vmem>>, %arg6: memref<64x64xf32, #tpu.memory_space<vmem>>, %arg7: memref<1x64xf32, #tpu.memory_space<vmem>>, %arg8: memref<64x16xf32, #tpu.memory_space<vmem>>, %arg9: memref<1x16xf32, #tpu.memory_space<vmem>>, %arg10: memref<8x16xf32, #tpu.memory_space<vmem>>) attributes {dimension_semantics = [#tpu.dimension_semantics<parallel>], iteration_bounds = array<i64: 1>, scalar_prefetch = 0 : i64, scratch_operands = 0 : i64, tpu.core_type = #tpu.core_type<tc>, window_params = [{transform_indices = @transform_0, window_bounds = array<i64: 8, 24>}, {transform_indices = @transform_1, window_bounds = array<i64: 8, 8>}, {pipeline_mode = #tpu.pipeline_mode<synchronous>, transform_indices = @transform_2, window_bounds = array<i64: 24, 64>}, {pipeline_mode = #tpu.pipeline_mode<synchronous>, transform_indices = @transform_3, window_bounds = array<i64: 8, 64>}, {pipeline_mode = #tpu.pipeline_mode<synchronous>, transform_indices = @transform_4, window_bounds = array<i64: 1, 64>}, {pipeline_mode = #tpu.pipeline_mode<synchronous>, transform_indices = @transform_5, window_bounds = array<i64: 64, 64>}, {pipeline_mode = #tpu.pipeline_mode<synchronous>, transform_indices = @transform_6, window_bounds = array<i64: 1, 64>}, {pipeline_mode = #tpu.pipeline_mode<synchronous>, transform_indices = @transform_7, window_bounds = array<i64: 64, 16>}, {pipeline_mode = #tpu.pipeline_mode<synchronous>, transform_indices = @transform_8, window_bounds = array<i64: 1, 16>}, {transform_indices = @transform_9, window_bounds = array<i64: 8, 16>}]} {
    %c0 = arith.constant 0 : index
    %c0_0 = arith.constant 0 : index
    %0 = vector.load %arg1[%c0, %c0_0] : memref<8x24xf32, #tpu.memory_space<vmem>>, vector<8x24xf32>
    %c0_1 = arith.constant 0 : index
    %c0_2 = arith.constant 0 : index
    %1 = vector.load %arg3[%c0_1, %c0_2] : memref<24x64xf32, #tpu.memory_space<vmem>>, vector<24x64xf32>
    %cst = arith.constant dense<0.000000e+00> : vector<8x64xf32>
    %2 = tpu.matmul %0, %1, %cst {dimension_numbers = #tpu.dot_dimension_numbers<[1], [0], [0], [1], [0, 0, 1, 1], [], []>} : vector<8x24xf32>, vector<24x64xf32>, vector<8x64xf32> -> vector<8x64xf32>
    %c0_3 = arith.constant 0 : index
    %c0_4 = arith.constant 0 : index
    %3 = vector.load %arg2[%c0_3, %c0_4] : memref<8x8xf32, #tpu.memory_space<vmem>>, vector<8x8xf32>
    %c0_5 = arith.constant 0 : index
    %c0_6 = arith.constant 0 : index
    %4 = vector.load %arg4[%c0_5, %c0_6] : memref<8x64xf32, #tpu.memory_space<vmem>>, vector<8x64xf32>
    %cst_7 = arith.constant dense<0.000000e+00> : vector<8x64xf32>
    %5 = tpu.matmul %3, %4, %cst_7 {dimension_numbers = #tpu.dot_dimension_numbers<[1], [0], [0], [1], [0, 0, 1, 1], [], []>} : vector<8x8xf32>, vector<8x64xf32>, vector<8x64xf32> -> vector<8x64xf32>
    %6 = arith.addf %2, %5 : vector<8x64xf32>
    %c0_8 = arith.constant 0 : index
    %c0_9 = arith.constant 0 : index
    %7 = vector.load %arg5[%c0_8, %c0_9] : memref<1x64xf32, #tpu.memory_space<vmem>>, vector<1x64xf32>
    %8 = vector.broadcast %7 : vector<1x64xf32> to vector<8x64xf32>
    %9 = arith.addf %6, %8 : vector<8x64xf32>
    %cst_10 = arith.constant 0.000000e+00 : f32
    %10 = vector.broadcast %cst_10 : f32 to vector<8x64xf32>
    %11 = arith.minimumf %9, %10 : vector<8x64xf32>
    %cst_11 = arith.constant 5.000000e-01 : f32
    %12 = vector.broadcast %cst_11 : f32 to vector<8x64xf32>
    %13 = arith.mulf %11, %12 : vector<8x64xf32>
    %14 = math.tanh %13 : vector<8x64xf32>
    %15 = math.exp %11 : vector<8x64xf32>
    %cst_12 = arith.constant 1.000000e+00 : f32
    %16 = vector.broadcast %cst_12 : f32 to vector<8x64xf32>
    %17 = arith.addf %15, %16 : vector<8x64xf32>
    %18 = arith.mulf %14, %17 : vector<8x64xf32>
    %cst_13 = arith.constant 0.000000e+00 : f32
    %19 = vector.broadcast %cst_13 : f32 to vector<8x64xf32>
    %20 = arith.cmpf ogt, %9, %19 : vector<8x64xf32>
    %21 = arith.select %20, %9, %18 : vector<8x64xi1>, vector<8x64xf32>
    %c0_14 = arith.constant 0 : index
    %c0_15 = arith.constant 0 : index
    %22 = vector.load %arg6[%c0_14, %c0_15] : memref<64x64xf32, #tpu.memory_space<vmem>>, vector<64x64xf32>
    %cst_16 = arith.constant dense<0.000000e+00> : vector<8x64xf32>
    %23 = tpu.matmul %21, %22, %cst_16 {dimension_numbers = #tpu.dot_dimension_numbers<[1], [0], [0], [1], [0, 0, 1, 1], [], []>} : vector<8x64xf32>, vector<64x64xf32>, vector<8x64xf32> -> vector<8x64xf32>
    %c0_17 = arith.constant 0 : index
    %c0_18 = arith.constant 0 : index
    %24 = vector.load %arg7[%c0_17, %c0_18] : memref<1x64xf32, #tpu.memory_space<vmem>>, vector<1x64xf32>
    %25 = vector.broadcast %24 : vector<1x64xf32> to vector<8x64xf32>
    %26 = arith.addf %23, %25 : vector<8x64xf32>
    %cst_19 = arith.constant 0.000000e+00 : f32
    %27 = vector.broadcast %cst_19 : f32 to vector<8x64xf32>
    %28 = arith.minimumf %26, %27 : vector<8x64xf32>
    %cst_20 = arith.constant 5.000000e-01 : f32
    %29 = vector.broadcast %cst_20 : f32 to vector<8x64xf32>
    %30 = arith.mulf %28, %29 : vector<8x64xf32>
    %31 = math.tanh %30 : vector<8x64xf32>
    %32 = math.exp %28 : vector<8x64xf32>
    %cst_21 = arith.constant 1.000000e+00 : f32
    %33 = vector.broadcast %cst_21 : f32 to vector<8x64xf32>
    %34 = arith.addf %32, %33 : vector<8x64xf32>
    %35 = arith.mulf %31, %34 : vector<8x64xf32>
    %cst_22 = arith.constant 0.000000e+00 : f32
    %36 = vector.broadcast %cst_22 : f32 to vector<8x64xf32>
    %37 = arith.cmpf ogt, %26, %36 : vector<8x64xf32>
    %38 = arith.select %37, %26, %35 : vector<8x64xi1>, vector<8x64xf32>
    %c0_23 = arith.constant 0 : index
    %c0_24 = arith.constant 0 : index
    %39 = vector.load %arg8[%c0_23, %c0_24] : memref<64x16xf32, #tpu.memory_space<vmem>>, vector<64x16xf32>
    %cst_25 = arith.constant dense<0.000000e+00> : vector<8x16xf32>
    %40 = tpu.matmul %38, %39, %cst_25 {dimension_numbers = #tpu.dot_dimension_numbers<[1], [0], [0], [1], [0, 0, 1, 1], [], []>} : vector<8x64xf32>, vector<64x16xf32>, vector<8x16xf32> -> vector<8x16xf32>
    %c0_26 = arith.constant 0 : index
    %c0_27 = arith.constant 0 : index
    %41 = vector.load %arg9[%c0_26, %c0_27] : memref<1x16xf32, #tpu.memory_space<vmem>>, vector<1x16xf32>
    %42 = vector.broadcast %41 : vector<1x16xf32> to vector<8x16xf32>
    %43 = arith.addf %40, %42 : vector<8x16xf32>
    %c0_28 = arith.constant 0 : index
    %c0_29 = arith.constant 0 : index
    %44 = vector.load %arg10[%c0_28, %c0_29] : memref<8x16xf32, #tpu.memory_space<vmem>>, vector<8x16xf32>
    tpu.vector_store %arg10[%c0_28, %c0_29], %43 {strides = array<i32>} : memref<8x16xf32, #tpu.memory_space<vmem>>, vector<8x16xf32>,
    return
  }
  func.func @transform_0(%arg0: i32) -> (i32, i32) {
    %c0_i32 = arith.constant 0 : i32
    %c0_i32_0 = arith.constant 0 : i32
    return %arg0, %c0_i32 : i32, i32
  }
  func.func @transform_1(%arg0: i32) -> (i32, i32) {
    %c0_i32 = arith.constant 0 : i32
    %c0_i32_0 = arith.constant 0 : i32
    return %arg0, %c0_i32 : i32, i32
  }
  func.func @transform_2(%arg0: i32) -> (i32, i32) {
    %c0_i32 = arith.constant 0 : i32
    %c0_i32_0 = arith.constant 0 : i32
    %c0_i32_1 = arith.constant 0 : i32
    return %c0_i32, %c0_i32_0 : i32, i32
  }
  func.func @transform_3(%arg0: i32) -> (i32, i32) {
    %c0_i32 = arith.constant 0 : i32
    %c0_i32_0 = arith.constant 0 : i32
    %c0_i32_1 = arith.constant 0 : i32
    return %c0_i32, %c0_i32_0 : i32, i32
  }
  func.func @transform_4(%arg0: i32) -> (i32, i32) {
    %c0_i32 = arith.constant 0 : i32
    %c0_i32_0 = arith.constant 0 : i32
    %c0_i32_1 = arith.constant 0 : i32
    return %c0_i32, %c0_i32_0 : i32, i32
  }
  func.func @transform_5(%arg0: i32) -> (i32, i32) {
    %c0_i32 = arith.constant 0 : i32
    %c0_i32_0 = arith.constant 0 : i32
    %c0_i32_1 = arith.constant 0 : i32
    return %c0_i32, %c0_i32_0 : i32, i32
  }
  func.func @transform_6(%arg0: i32) -> (i32, i32) {
    %c0_i32 = arith.constant 0 : i32
    %c0_i32_0 = arith.constant 0 : i32
    %c0_i32_1 = arith.constant 0 : i32
    return %c0_i32, %c0_i32_0 : i32, i32
  }
  func.func @transform_7(%arg0: i32) -> (i32, i32) {
    %c0_i32 = arith.constant 0 : i32
    %c0_i32_0 = arith.constant 0 : i32
    %c0_i32_1 = arith.constant 0 : i32
    return %c0_i32, %c0_i32_0 : i32, i32
  }
  func.func @transform_8(%arg0: i32) -> (i32, i32) {
    %c0_i32 = arith.constant 0 : i32
    %c0_i32_0 = arith.constant 0 : i32
    %c0_i32_1 = arith.constant 0 : i32
    return %c0_i32, %c0_i32_0 : i32, i32
  }
  func.func @transform_9(%arg0: i32) -> (i32, i32) {
    %c0_i32 = arith.constant 0 : i32
    %c0_i32_0 = arith.constant 0 : i32
    return %arg0, %c0_i32 : i32, i32
  }
}

</mosaic_0001>

<llo_original>
// kernel: tpu_custom_call.1
$region0: #{tpu_custom_call.1}
  #allocation0 [shape = 'u32[]', space=smem, size = 0x4, offset = 0x4, fixed_abs, tag = 'smem constant byte address 0x4 - core index']
  #allocation1 [shape = 'u32[144,128]{1,0:T(1,128)}', space=vmem, size = 0x12000, scoped, tag = 'internal scratch']
  %s0 = inlined_call_operand.hbm [shape: f32[8,24], index: 0, kind: input, shape index: {}]
  %s1 = inlined_call_operand.hbm [shape: f32[8,8], index: 1, kind: input, shape index: {}]
  %s2 = inlined_call_operand.vmem [shape: f32[24,64], index: 2, kind: input, shape index: {}]
  %s3 = inlined_call_operand.hbm [shape: f32[8,64], index: 3, kind: input, shape index: {}]
  %s4 = inlined_call_operand.vmem [shape: f32[1,64], index: 4, kind: input, shape index: {}]
  %s5 = inlined_call_operand.vmem [shape: f32[64,64], index: 5, kind: input, shape index: {}]
  %s6 = inlined_call_operand.vmem [shape: f32[1,64], index: 6, kind: input, shape index: {}]
  %s7 = inlined_call_operand.vmem [shape: f32[64,16], index: 7, kind: input, shape index: {}]
  %s8 = inlined_call_operand.vmem [shape: f32[1,16], index: 8, kind: input, shape index: {}]
  %s9 = inlined_call_operand.hbm [shape: f32[8,16], index: 9, kind: output, shape index: {}]
  %s10 = sld [smem:[#allocation0]]
  $region58: #{tpu_custom_call.1} parent=0
    _
  %s12 = ssub.s32 1, %s10
  %s13 = scalar_select 0, %s12, %s10
  $region1: #{tpu_custom_call.1} parent=0
    #allocation2 [shape = 'u8[4096]{0}', space=vmem, size = 0x1000, scoped, tag = 'input window, operand 0, single buffered']
    #allocation3 [shape = 's32[1]{0}', space=sflag, size = 0x4, scoped, tag = 'scoped memory for tpu_custom_call.1']
    #allocation4 [shape = 's32[1]{0}', space=sflag, size = 0x4, scoped, tag = 'scoped memory for tpu_custom_call.1']
    #allocation5 [shape = 'u8[4096]{0}', space=vmem, size = 0x1000, scoped, tag = 'input window, operand 1, single buffered']
    #allocation6 [shape = 's32[1]{0}', space=sflag, size = 0x4, scoped, tag = 'scoped memory for tpu_custom_call.1']
    #allocation7 [shape = 'u8[4096]{0}', space=vmem, size = 0x1000, scoped, tag = 'input window, operand 3, single buffered']
    #allocation8 [shape = 'u8[4096]{0}', space=vmem, size = 0x1000, scoped, tag = 'output window, operand 0, single buffered']
    %14 = vsyncpa [#allocation3], 0
    %15 = vsyncpa [#allocation6], 0
    %16 = vsyncpa [#allocation4], 0
    // Predicated region
    $region2: #{tpu_custom_call.1} parent=1 // pred_check
      _
    $region3: #{tpu_custom_call.1} parent=1 // pred_check_branch
      %18 = sbr.rel (0) target = $region5
    $region4: #{tpu_custom_call.1} parent=1 // pred_region
      %s20 = ssub.s32 128, 128
      %21 = vsyncadd [#allocation3], %s20
      %s23 = sshll.u32 [#allocation2], 4
      %s24 = int_to_ptr.vmem [resolvable:$true] %s23
      %26 = dma.hbm_to_vmem [thread:$0]  %s0, 128, %s24, [#allocation3]
    $region5: #{tpu_custom_call.1} parent=1 // pred_fallthru
      _
    // Predicated region
    $region6: #{tpu_custom_call.1} parent=1 // pred_check
      _
    $region7: #{tpu_custom_call.1} parent=1 // pred_check_branch
      %28 = sbr.rel (0) target = $region9
    $region8: #{tpu_custom_call.1} parent=1 // pred_region
      %s30 = ssub.s32 128, 128
      %31 = vsyncadd [#allocation6], %s30
      %s33 = sshll.u32 [#allocation5], 4
      %s34 = int_to_ptr.vmem [resolvable:$true] %s33
      %36 = dma.hbm_to_vmem [thread:$0]  %s1, 128, %s34, [#allocation6]
    $region9: #{tpu_custom_call.1} parent=1 // pred_fallthru
      _
    // Predicated region
    $region10: #{tpu_custom_call.1} parent=1 // pred_check
      _
    $region11: #{tpu_custom_call.1} parent=1 // pred_check_branch
      %38 = sbr.rel (0) target = $region13
    $region12: #{tpu_custom_call.1} parent=1 // pred_region
      _
    $region13: #{tpu_custom_call.1} parent=1 // pred_fallthru
      _
    // Predicated region
    $region14: #{tpu_custom_call.1} parent=1 // pred_check
      _
    $region15: #{tpu_custom_call.1} parent=1 // pred_check_branch
      %40 = sbr.rel (0) target = $region17
    $region16: #{tpu_custom_call.1} parent=1 // pred_region
      %s42 = ssub.s32 128, 128
      %43 = vsyncadd [#allocation6], %s42
      %s45 = sshll.u32 [#allocation7], 4
      %s46 = int_to_ptr.vmem [resolvable:$true] %s45
      %48 = dma.hbm_to_vmem [thread:$0]  %s3, 128, %s46, [#allocation6]
    $region17: #{tpu_custom_call.1} parent=1 // pred_fallthru
      _
    // Predicated region
    $region18: #{tpu_custom_call.1} parent=1 // pred_check
      _
    $region19: #{tpu_custom_call.1} parent=1 // pred_check_branch
      %50 = sbr.rel (0) target = $region21
    $region20: #{tpu_custom_call.1} parent=1 // pred_region
      _
    $region21: #{tpu_custom_call.1} parent=1 // pred_fallthru
      _
    // Predicated region
    $region22: #{tpu_custom_call.1} parent=1 // pred_check
      _
    $region23: #{tpu_custom_call.1} parent=1 // pred_check_branch
      %52 = sbr.rel (0) target = $region25
    $region24: #{tpu_custom_call.1} parent=1 // pred_region
      _
    $region25: #{tpu_custom_call.1} parent=1 // pred_fallthru
      _
    // Predicated region
    $region26: #{tpu_custom_call.1} parent=1 // pred_check
      _
    $region27: #{tpu_custom_call.1} parent=1 // pred_check_branch
      %54 = sbr.rel (0) target = $region29
    $region28: #{tpu_custom_call.1} parent=1 // pred_region
      _
    $region29: #{tpu_custom_call.1} parent=1 // pred_fallthru
      _
    // Predicated region
    $region30: #{tpu_custom_call.1} parent=1 // pred_check
      _
    $region31: #{tpu_custom_call.1} parent=1 // pred_check_branch
      %56 = sbr.rel (0) target = $region33
    $region32: #{tpu_custom_call.1} parent=1 // pred_region
      _
    $region33: #{tpu_custom_call.1} parent=1 // pred_fallthru
      _
    // Predicated region
    $region34: #{tpu_custom_call.1} parent=1 // pred_check
      _
    $region35: #{tpu_custom_call.1} parent=1 // pred_check_branch
      %58 = sbr.rel (0) target = $region37
    $region36: #{tpu_custom_call.1} parent=1 // pred_region
      _
    $region37: #{tpu_custom_call.1} parent=1 // pred_fallthru
      _
    // Predicated region
    $region38: #{tpu_custom_call.1} parent=1 // pred_check
      _
    $region39: #{tpu_custom_call.1} parent=1 // pred_check_branch
      %60 = sbr.rel (0) target = $region41
    $region40: #{tpu_custom_call.1} parent=1 // pred_region
      %61 = dma.done [#allocation3], 128
    $region41: #{tpu_custom_call.1} parent=1 // pred_fallthru
      _
    // Predicated region
    $region42: #{tpu_custom_call.1} parent=1 // pred_check
      _
    $region43: #{tpu_custom_call.1} parent=1 // pred_check_branch
      %63 = sbr.rel (0) target = $region45
    $region44: #{tpu_custom_call.1} parent=1 // pred_region
      %64 = dma.done [#allocation6], 128
    $region45: #{tpu_custom_call.1} parent=1 // pred_fallthru
      _
    // Predicated region
    $region46: #{tpu_custom_call.1} parent=1 // pred_check
      _
    $region47: #{tpu_custom_call.1} parent=1 // pred_check_branch
      %66 = sbr.rel (0) target = $region49
    $region48: #{tpu_custom_call.1} parent=1 // pred_region
      %67 = dma.done [#allocation6], 128
    $region49: #{tpu_custom_call.1} parent=1 // pred_fallthru
      _
    %v68 = vld [vmem:[#allocation2] sm:$0xff]
    %v69 = vld [vmem:[%s2] sm:$0xff]
    %v70 = vld [vmem:[%s2 + $0x8] sm:$0xff]
    %v71 = vld [vmem:[%s2 + $0x10] sm:$0xff]
    %v72 = vld [vmem:[#allocation5] sm:$0xff]
    %v73 = vld [vmem:[#allocation7] sm:$0xff]
    %vm74 = vcmask 64512
    %v76 = vsel %vm74, %v72, 0
    %78 = vmatprep.subr.mxu0 0.0
    %79 = vmatpush1.msra.mxu0 %v73
    %80 = vmatprep.subr.mxu0 0.0
    %81 = vmatpush1.msra.mxu0 0.0
    %82 = vmatprep.subr.mxu0 0.0
    %83 = vmatpush1.msra.mxu0 0.0
    %84 = vmatprep.subr.mxu0 0.0
    %85 = vmatpush1.msra.mxu0 0.0
    %86 = vmatprep.subr.mxu0 0.0
    %87 = vmatpush1.msra.mxu0 0.0
    %88 = vmatprep.subr.mxu0 0.0
    %89 = vmatpush1.msra.mxu0 0.0
    %90 = vmatprep.subr.mxu0 0.0
    %91 = vmatpush1.msra.mxu0 0.0
    %92 = vmatprep.subr.mxu0 0.0
    %93 = vmatpush1.msra.mxu0 0.0
    %94 = vmatprep.subr.mxu0 0.0
    %95 = vmatpush1.msra.mxu0 0.0
    %96 = vmatprep.subr.mxu0 0.0
    %97 = vmatpush1.msra.mxu0 0.0
    %98 = vmatprep.subr.mxu0 0.0
    %99 = vmatpush1.msra.mxu0 0.0
    %100 = vmatprep.subr.mxu0 0.0
    %101 = vmatpush1.msra.mxu0 0.0
    %102 = vmatprep.subr.mxu0 0.0
    %103 = vmatpush1.msra.mxu0 0.0
    %104 = vmatprep.subr.mxu0 0.0
    %105 = vmatpush1.msra.mxu0 0.0
    %106 = vmatprep.subr.mxu0 0.0
    %107 = vmatpush1.msra.mxu0 0.0
    %108 = vmatprep.subr.mxu0 0.0
    %109 = vmatpush1.msra.mxu0 0.0
    %110 = vmatprep.subr.mxu0 0.0
    %111 = vmatpush1.msra.mxu0 0.0
    %112 = vmatprep.subr.mxu0 0.0
    %113 = vmatpush1.msra.mxu0 0.0
    %114 = vmatprep.subr.mxu0 0.0
    %115 = vmatpush1.msra.mxu0 0.0
    %116 = vmatprep.subr.mxu0 0.0
    %117 = vmatpush1.msra.mxu0 0.0
    %118 = vmatprep.subr.mxu0 0.0
    %119 = vmatpush1.msra.mxu0 0.0
    %120 = vmatprep.subr.mxu0 0.0
    %121 = vmatpush1.msra.mxu0 0.0
    %122 = vmatprep.subr.mxu0 0.0
    %123 = vmatpush1.msra.mxu0 0.0
    %124 = vmatprep.subr.mxu0 0.0
    %125 = vmatpush1.msra.mxu0 0.0
    %126 = vmatprep.subr.mxu0 0.0
    %127 = vmatpush1.msra.mxu0 0.0
    %128 = vmatprep.subr.mxu0 0.0
    %129 = vmatpush1.msra.mxu0 0.0
    %130 = vmatprep.subr.mxu0 0.0
    %131 = vmatpush1.msra.mxu0 0.0
    %132 = vmatprep.subr.mxu0 0.0
    %133 = vmatpush1.msra.mxu0 0.0
    %134 = vmatprep.subr.mxu0 0.0
    %135 = vmatpush1.msra.mxu0 0.0
    %136 = vmatprep.subr.mxu0 0.0
    %137 = vmatpush1.msra.mxu0 0.0
    %138 = vmatprep.subr.mxu0 0.0
    %139 = vmatpush1.msra.mxu0 0.0
    %140 = vmatprep.subr.mxu0 0.0
    %141 = vmatpush1.msra.mxu0 0.0
    %142 = vmatprep.mubr.f32.mxu0 0.0
    %143 = vmatmul.mubr.f32.gmra.mrb[0].mxu0 %v76
    %v144 = vpop.f32.mrb[0].mxu0
    %v145 = vadd.f32 0.0, %v144
    %v146 = vpop.f32.mrb[0].mxu0
    %147 = vdwg.mxu0
    %vm148 = vcmask 195584
    %v150 = vsel %vm148, %v68, 0
    %152 = vmatprep.subr.mxu0 0.0
    %153 = vmatpush1.msra.mxu0 %v69
    %154 = vmatprep.subr.mxu0 0.0
    %155 = vmatpush1.msra.mxu0 %v70
    %156 = vmatprep.subr.mxu0 0.0
    %157 = vmatpush1.msra.mxu0 %v71
    %158 = vmatprep.subr.mxu0 0.0
    %159 = vmatpush1.msra.mxu0 0.0
    %160 = vmatprep.subr.mxu0 0.0
    %161 = vmatpush1.msra.mxu0 0.0
    %162 = vmatprep.subr.mxu0 0.0
    %163 = vmatpush1.msra.mxu0 0.0
    %164 = vmatprep.subr.mxu0 0.0
    %165 = vmatpush1.msra.mxu0 0.0
    %166 = vmatprep.subr.mxu0 0.0
    %167 = vmatpush1.msra.mxu0 0.0
    %168 = vmatprep.subr.mxu0 0.0
    %169 = vmatpush1.msra.mxu0 0.0
    %170 = vmatprep.subr.mxu0 0.0
    %171 = vmatpush1.msra.mxu0 0.0
    %172 = vmatprep.subr.mxu0 0.0
    %173 = vmatpush1.msra.mxu0 0.0
    %174 = vmatprep.subr.mxu0 0.0
    %175 = vmatpush1.msra.mxu0 0.0
    %176 = vmatprep.subr.mxu0 0.0
    %177 = vmatpush1.msra.mxu0 0.0
    %178 = vmatprep.subr.mxu0 0.0
    %179 = vmatpush1.msra.mxu0 0.0
    %180 = vmatprep.subr.mxu0 0.0
    %181 = vmatpush1.msra.mxu0 0.0
    %182 = vmatprep.subr.mxu0 0.0
    %183 = vmatpush1.msra.mxu0 0.0
    %184 = vmatprep.subr.mxu0 0.0
    %185 = vmatpush1.msra.mxu0 0.0
    %186 = vmatprep.subr.mxu0 0.0
    %187 = vmatpush1.msra.mxu0 0.0
    %188 = vmatprep.subr.mxu0 0.0
    %189 = vmatpush1.msra.mxu0 0.0
    %190 = vmatprep.subr.mxu0 0.0
    %191 = vmatpush1.msra.mxu0 0.0
    %192 = vmatprep.subr.mxu0 0.0
    %193 = vmatpush1.msra.mxu0 0.0
    %194 = vmatprep.subr.mxu0 0.0
    %195 = vmatpush1.msra.mxu0 0.0
    %196 = vmatprep.subr.mxu0 0.0
    %197 = vmatpush1.msra.mxu0 0.0
    %198 = vmatprep.subr.mxu0 0.0
    %199 = vmatpush1.msra.mxu0 0.0
    %200 = vmatprep.subr.mxu0 0.0
    %201 = vmatpush1.msra.mxu0 0.0
    %202 = vmatprep.subr.mxu0 0.0
    %203 = vmatpush1.msra.mxu0 0.0
    %204 = vmatprep.subr.mxu0 0.0
    %205 = vmatpush1.msra.mxu0 0.0
    %206 = vmatprep.subr.mxu0 0.0
    %207 = vmatpush1.msra.mxu0 0.0
    %208 = vmatprep.subr.mxu0 0.0
    %209 = vmatpush1.msra.mxu0 0.0
    %210 = vmatprep.subr.mxu0 0.0
    %211 = vmatpush1.msra.mxu0 0.0
    %212 = vmatprep.subr.mxu0 0.0
    %213 = vmatpush1.msra.mxu0 0.0
    %214 = vmatprep.subr.mxu0 0.0
    %215 = vmatpush1.msra.mxu0 0.0
    %216 = vmatprep.mubr.f32.mxu0 0.0
    %217 = vmatmul.mubr.f32.gmra.mrb[0].mxu0 %v150
    %v218 = vpop.f32.mrb[0].mxu0
    %v219 = vadd.f32 %v145, %v218
    %v220 = vpop.f32.mrb[0].mxu0
    %221 = vdwg.mxu0
    %v222 = vld [vmem:[%s4] sm:$0x1]
    %v224 = vlaneseq
    %v225 = vshrl.u32 %v224, 7
    %v226 = vsub.s32 0, %v225
    %v227 = vrot.slane %v222, %v226
    %v229 = vadd.f32 %v219, %v227
    %v230 = vmin.f32 %v229, 0.0
    %v231 = vmul.f32 %v230, 0.5
    %v232 = vtanh.pop %v231
    %v233 = vmul.f32 %v230, 1.442695
    %v234 = vpow.pop %v233
    %v235 = vadd.f32 %v234, 1.0
    %v236 = vmul.f32 %v232, %v235
    %vm237 = vcmp.gt.f32.partialorder %v229, 0.0
    %v238 = vsel %vm237, %v229, %v236
    %v239 = vld [vmem:[%s5] sm:$0xff]
    %v240 = vld [vmem:[%s5 + $0x8] sm:$0xff]
    %v241 = vld [vmem:[%s5 + $0x10] sm:$0xff]
    %v242 = vld [vmem:[%s5 + $0x18] sm:$0xff]
    %v243 = vld [vmem:[%s5 + $0x20] sm:$0xff]
    %v244 = vld [vmem:[%s5 + $0x28] sm:$0xff]
    %v245 = vld [vmem:[%s5 + $0x30] sm:$0xff]
    %v246 = vld [vmem:[%s5 + $0x38] sm:$0xff]
    %v247 = vld [vmem:[%s6] sm:$0x1]
    %v249 = vlaneseq
    %v250 = vshrl.u32 %v249, 7
    %v251 = vsub.s32 0, %v250
    %v252 = vrot.slane %v247, %v251
    %vm254 = vcmask 523264
    %v256 = vsel %vm254, %v238, 0
    %258 = vmatprep.subr.mxu0 0.0
    %259 = vmatpush1.msra.mxu0 %v239
    %260 = vmatprep.subr.mxu0 0.0
    %261 = vmatpush1.msra.mxu0 %v240
    %262 = vmatprep.subr.mxu0 0.0
    %263 = vmatpush1.msra.mxu0 %v241
    %264 = vmatprep.subr.mxu0 0.0
    %265 = vmatpush1.msra.mxu0 %v242
    %266 = vmatprep.subr.mxu0 0.0
    %267 = vmatpush1.msra.mxu0 %v243
    %268 = vmatprep.subr.mxu0 0.0
    %269 = vmatpush1.msra.mxu0 %v244
    %270 = vmatprep.subr.mxu0 0.0
    %271 = vmatpush1.msra.mxu0 %v245
    %272 = vmatprep.subr.mxu0 0.0
    %273 = vmatpush1.msra.mxu0 %v246
    %274 = vmatprep.subr.mxu0 0.0
    %275 = vmatpush1.msra.mxu0 0.0
    %276 = vmatprep.subr.mxu0 0.0
    %277 = vmatpush1.msra.mxu0 0.0
    %278 = vmatprep.subr.mxu0 0.0
    %279 = vmatpush1.msra.mxu0 0.0
    %280 = vmatprep.subr.mxu0 0.0
    %281 = vmatpush1.msra.mxu0 0.0
    %282 = vmatprep.subr.mxu0 0.0
    %283 = vmatpush1.msra.mxu0 0.0
    %284 = vmatprep.subr.mxu0 0.0
    %285 = vmatpush1.msra.mxu0 0.0
    %286 = vmatprep.subr.mxu0 0.0
    %287 = vmatpush1.msra.mxu0 0.0
    %288 = vmatprep.subr.mxu0 0.0
    %289 = vmatpush1.msra.mxu0 0.0
    %290 = vmatprep.subr.mxu0 0.0
    %291 = vmatpush1.msra.mxu0 0.0
    %292 = vmatprep.subr.mxu0 0.0
    %293 = vmatpush1.msra.mxu0 0.0
    %294 = vmatprep.subr.mxu0 0.0
    %295 = vmatpush1.msra.mxu0 0.0
    %296 = vmatprep.subr.mxu0 0.0
    %297 = vmatpush1.msra.mxu0 0.0
    %298 = vmatprep.subr.mxu0 0.0
    %299 = vmatpush1.msra.mxu0 0.0
    %300 = vmatprep.subr.mxu0 0.0
    %301 = vmatpush1.msra.mxu0 0.0
    %302 = vmatprep.subr.mxu0 0.0
    %303 = vmatpush1.msra.mxu0 0.0
    %304 = vmatprep.subr.mxu0 0.0
    %305 = vmatpush1.msra.mxu0 0.0
    %306 = vmatprep.subr.mxu0 0.0
    %307 = vmatpush1.msra.mxu0 0.0
    %308 = vmatprep.subr.mxu0 0.0
    %309 = vmatpush1.msra.mxu0 0.0
    %310 = vmatprep.subr.mxu0 0.0
    %311 = vmatpush1.msra.mxu0 0.0
    %312 = vmatprep.subr.mxu0 0.0
    %313 = vmatpush1.msra.mxu0 0.0
    %314 = vmatprep.subr.mxu0 0.0
    %315 = vmatpush1.msra.mxu0 0.0
    %316 = vmatprep.subr.mxu0 0.0
    %317 = vmatpush1.msra.mxu0 0.0
    %318 = vmatprep.subr.mxu0 0.0
    %319 = vmatpush1.msra.mxu0 0.0
    %320 = vmatprep.subr.mxu0 0.0
    %321 = vmatpush1.msra.mxu0 0.0
    %322 = vmatprep.mubr.f32.mxu0 0.0
    %323 = vmatmul.mubr.f32.gmra.mrb[0].mxu0 %v256
    %v324 = vpop.f32.mrb[0].mxu0
    %v325 = vadd.f32 %v252, %v324
    %v326 = vpop.f32.mrb[0].mxu0
    %327 = vdwg.mxu0
    %v328 = vmin.f32 %v325, 0.0
    %v329 = vmul.f32 %v328, 0.5
    %v330 = vtanh.pop %v329
    %v331 = vmul.f32 %v328, 1.442695
    %v332 = vpow.pop %v331
    %v333 = vadd.f32 %v332, 1.0
    %v334 = vmul.f32 %v330, %v333
    %vm335 = vcmp.gt.f32.partialorder %v325, 0.0
    %v336 = vsel %vm335, %v325, %v334
    %v337 = vld [vmem:[%s7] sm:$0xff]
    %v338 = vld [vmem:[%s7 + $0x8] sm:$0xff]
    %v339 = vld [vmem:[%s7 + $0x10] sm:$0xff]
    %v340 = vld [vmem:[%s7 + $0x18] sm:$0xff]
    %v341 = vld [vmem:[%s7 + $0x20] sm:$0xff]
    %v342 = vld [vmem:[%s7 + $0x28] sm:$0xff]
    %v343 = vld [vmem:[%s7 + $0x30] sm:$0xff]
    %v344 = vld [vmem:[%s7 + $0x38] sm:$0xff]
    %v345 = vld [vmem:[%s8] sm:$0x1]
    %v347 = vlaneseq
    %v348 = vshrl.u32 %v347, 7
    %v349 = vsub.s32 0, %v348
    %v350 = vrot.slane %v345, %v349
    %v353 = vsel %vm254, %v336, 0
    %355 = vmatprep.subr.mxu0 0.0
    %356 = vmatpush1.msra.mxu0 %v337
    %357 = vmatprep.subr.mxu0 0.0
    %358 = vmatpush1.msra.mxu0 %v338
    %359 = vmatprep.subr.mxu0 0.0
    %360 = vmatpush1.msra.mxu0 %v339
    %361 = vmatprep.subr.mxu0 0.0
    %362 = vmatpush1.msra.mxu0 %v340
    %363 = vmatprep.subr.mxu0 0.0
    %364 = vmatpush1.msra.mxu0 %v341
    %365 = vmatprep.subr.mxu0 0.0
    %366 = vmatpush1.msra.mxu0 %v342
    %367 = vmatprep.subr.mxu0 0.0
    %368 = vmatpush1.msra.mxu0 %v343
    %369 = vmatprep.subr.mxu0 0.0
    %370 = vmatpush1.msra.mxu0 %v344
    %371 = vmatprep.subr.mxu0 0.0
    %372 = vmatpush1.msra.mxu0 0.0
    %373 = vmatprep.subr.mxu0 0.0
    %374 = vmatpush1.msra.mxu0 0.0
    %375 = vmatprep.subr.mxu0 0.0
    %376 = vmatpush1.msra.mxu0 0.0
    %377 = vmatprep.subr.mxu0 0.0
    %378 = vmatpush1.msra.mxu0 0.0
    %379 = vmatprep.subr.mxu0 0.0
    %380 = vmatpush1.msra.mxu0 0.0
    %381 = vmatprep.subr.mxu0 0.0
    %382 = vmatpush1.msra.mxu0 0.0
    %383 = vmatprep.subr.mxu0 0.0
    %384 = vmatpush1.msra.mxu0 0.0
    %385 = vmatprep.subr.mxu0 0.0
    %386 = vmatpush1.msra.mxu0 0.0
    %387 = vmatprep.subr.mxu0 0.0
    %388 = vmatpush1.msra.mxu0 0.0
    %389 = vmatprep.subr.mxu0 0.0
    %390 = vmatpush1.msra.mxu0 0.0
    %391 = vmatprep.subr.mxu0 0.0
    %392 = vmatpush1.msra.mxu0 0.0
    %393 = vmatprep.subr.mxu0 0.0
    %394 = vmatpush1.msra.mxu0 0.0
    %395 = vmatprep.subr.mxu0 0.0
    %396 = vmatpush1.msra.mxu0 0.0
    %397 = vmatprep.subr.mxu0 0.0
    %398 = vmatpush1.msra.mxu0 0.0
    %399 = vmatprep.subr.mxu0 0.0
    %400 = vmatpush1.msra.mxu0 0.0
    %401 = vmatprep.subr.mxu0 0.0
    %402 = vmatpush1.msra.mxu0 0.0
    %403 = vmatprep.subr.mxu0 0.0
    %404 = vmatpush1.msra.mxu0 0.0
    %405 = vmatprep.subr.mxu0 0.0
    %406 = vmatpush1.msra.mxu0 0.0
    %407 = vmatprep.subr.mxu0 0.0
    %408 = vmatpush1.msra.mxu0 0.0
    %409 = vmatprep.subr.mxu0 0.0
    %410 = vmatpush1.msra.mxu0 0.0
    %411 = vmatprep.subr.mxu0 0.0
    %412 = vmatpush1.msra.mxu0 0.0
    %413 = vmatprep.subr.mxu0 0.0
    %414 = vmatpush1.msra.mxu0 0.0
    %415 = vmatprep.subr.mxu0 0.0
    %416 = vmatpush1.msra.mxu0 0.0
    %417 = vmatprep.subr.mxu0 0.0
    %418 = vmatpush1.msra.mxu0 0.0
    %419 = vmatprep.mubr.f32.mxu0 0.0
    %420 = vmatmul.mubr.f32.gmra.mrb[0].mxu0 %v353
    %v421 = vpop.f32.mrb[0].mxu0
    %v422 = vadd.f32 %v350, %v421
    %v423 = vpop.f32.mrb[0].mxu0
    %424 = vdwg.mxu0
    %vm425 = vcmask 130048
    %426 = vst.msk [vmem:[#allocation8] sm:$0xff] %vm425, %v422
    // Predicated region
    $region50: #{tpu_custom_call.1} parent=1 // pred_check
      _
    $region51: #{tpu_custom_call.1} parent=1 // pred_check_branch
      %428 = sbr.rel (0) target = $region53
    $region52: #{tpu_custom_call.1} parent=1 // pred_region
      %s430 = ssub.s32 128, 128
      %431 = vsyncadd [#allocation4], %s430
      %s433 = sshll.u32 [#allocation8], 4
      %s434 = int_to_ptr.vmem [resolvable:$true] %s433
      %436 = dma.vmem_to_hbm [thread:$0]  %s434, 128, %s9, [#allocation4]
    $region53: #{tpu_custom_call.1} parent=1 // pred_fallthru
      _
    // Predicated region
    $region54: #{tpu_custom_call.1} parent=1 // pred_check
      _
    $region55: #{tpu_custom_call.1} parent=1 // pred_check_branch
      %438 = sbr.rel (0) target = $region57
    $region56: #{tpu_custom_call.1} parent=1 // pred_region
      %439 = dma.done [#allocation4], 128
    $region57: #{tpu_custom_call.1} parent=1 // pred_fallthru
      _
    %440 = vsyncpa [#allocation3], 1
    %441 = vsyncpa [#allocation6], 1
    %442 = vsyncpa [#allocation4], 1

</llo_original>
